<compile_context>
chip_gen: v5e
topology: v5e:2x2
jax: 0.10.0
libtpu: 0.0.40
codegen_flags: <defaults>
</compile_context>

<pallas_src>
import jax
import jax.numpy as jnp
from jax import lax
from jax.experimental import pallas as pl
from jax.experimental.pallas import tpu as pltpu

LN_EPS = 1e-5  # nn.LayerNorm default


def _gelu_exact(x):
    # matches torch.nn.GELU() default (erf-based).  A tanh-approximate GELU
    # (EUP slot) is cheaper but changes numerics vs PyTorch, so not used here.
    return 0.5 * x * (1.0 + lax.erf(x * 0.7071067811865476))


def _layernorm_2d(x, g, b, inv_n):
    """LayerNorm over the whole (S, F) tile (one batch element), one-pass stats."""
    s = jnp.sum(x, axis=1, keepdims=True)            # (S, 1)
    ss = jnp.sum(x * x, axis=1, keepdims=True)       # (S, 1)
    mu = jnp.sum(s, axis=0, keepdims=True) * inv_n   # (1, 1)
    var = jnp.sum(ss, axis=0, keepdims=True) * inv_n - mu * mu
    var = jnp.maximum(var, 0.0)
    return (x - mu) * lax.rsqrt(var + LN_EPS) * g + b


def _mixer_block_kernel(x_ref,
                        g1_ref, b1_ref, tw1_ref, tb1_ref, tw2_ref, tb2_ref,
                        g2_ref, b2_ref, cw1_ref, cb1_ref, cw2_ref, cb2_ref,
                        o_ref):
    """Fused MixerBlock for one batch element: (S, F) in -> (S, F) out."""
    S, F = x_ref.shape
    inv_n = 1.0 / (S * F)

    # ---------------- token-mixing half: x1 = x + Conv1(GELU(Conv0(LN1(x)))) ----
    y = _layernorm_2d(x_ref[...].astype(jnp.float32), g1_ref[...], b1_ref[...], inv_n)
    # contract over S with the weight on the LEFT so F stays the lane axis:
    h = jnp.dot(tw1_ref[...], y.astype(tw1_ref.dtype),
                preferred_element_type=jnp.float32) + tb1_ref[...]        # (Ht, F)
    h = _gelu_exact(h)
    t = jnp.dot(tw2_ref[...], h.astype(tw2_ref.dtype),
                preferred_element_type=jnp.float32) + tb2_ref[...]        # (S, F)
    # re-read x from the still-resident VMEM block (short live range) for residual
    x1 = x_ref[...].astype(jnp.float32) + t
    o_ref[...] = x1.astype(o_ref.dtype)      # stash x1 in the resident output block

    # ---------------- channel-mixing half: out = x1 + Lin1(GELU(Lin0(LN2(x1)))) --
    y = _layernorm_2d(x1, g2_ref[...], b2_ref[...], inv_n)                # (S, F)
    h = jnp.dot(y.astype(cw1_ref.dtype), cw1_ref[...],
                preferred_element_type=jnp.float32) + cb1_ref[...]        # (S, Hc)
    h = _gelu_exact(h)
    c = jnp.dot(h.astype(cw2_ref.dtype), cw2_ref[...],
                preferred_element_type=jnp.float32) + cb2_ref[...]        # (S, F)
    # re-read x1 from the output block for the final residual
    o_ref[...] = (o_ref[...].astype(jnp.float32) + c).astype(o_ref.dtype)


def _vmem_limit_bytes():
    try:
        phys = int(pltpu.get_tpu_info().vmem_capacity_bytes)
    except Exception:
        phys = 128 * 1024 * 1024
    # leave headroom for compiler scratch / double buffers: 3/4 of physical,
    # capped at 100 MiB  (-> ~48 MiB on v7x, ~96 MiB on v5e/v6e).
    return min((phys * 3) // 4, 100 * 1024 * 1024)


def mixer_block(x, params, *, matmul_dtype=jnp.bfloat16):
    """MixerBlock forward.  x: (B, S, F).  params: PyTorch-shaped tensors."""
    B, S, F = x.shape

    # Token conv weights are used on the LEFT of the matmul, so the PyTorch
    # layouts (Ht, S) / (S, Ht) are already correct -- no transpose needed.
    tw1 = params["tok_w1"][:, :, 0].astype(matmul_dtype)          # (Ht, S)
    tw2 = params["tok_w2"][:, :, 0].astype(matmul_dtype)          # (S, Ht)
    tb1 = params["tok_b1"][:, None]                               # (Ht, 1) sublane column
    tb2 = params["tok_b2"][:, None]                               # (S, 1)
    # Channel Linear weights go on the RIGHT: transpose once (weights only).
    cw1 = jnp.transpose(params["ch_w1"], (1, 0)).astype(matmul_dtype)   # (F, Hc)
    cw2 = jnp.transpose(params["ch_w2"], (1, 0)).astype(matmul_dtype)   # (Hc, F)
    cb1 = params["ch_b1"][None, :]                                # (1, Hc) lane row
    cb2 = params["ch_b2"][None, :]                                # (1, F)

    # Unblocked whole-array VMEM residents: no pipeline double-buffering.
    resident = pl.BlockSpec(memory_space=pltpu.MemorySpace.VMEM)
    # One batch element per grid step; batch dim squeezed out of the kernel view.
    act_spec = pl.BlockSpec((None, S, F), lambda i: (i, 0, 0))

    return pl.pallas_call(
        _mixer_block_kernel,
        out_shape=jax.ShapeDtypeStruct((B, S, F), x.dtype),
        grid=(B,),
        in_specs=[act_spec] + [resident] * 12,
        out_specs=act_spec,
        compiler_params=pltpu.CompilerParams(
            dimension_semantics=("parallel",),      # batch elements are independent
            vmem_limit_bytes=_vmem_limit_bytes(),
        ),
    )(x,
      params["norm1_w"], params["norm1_b"], tw1, tb1, tw2, tb2,
      params["norm2_w"], params["norm2_b"], cw1, cb1, cw2, cb2)


def mixer_block_ref(x, p):
    """Pure-JAX reference mirroring the PyTorch forward (for verification)."""
    def ln(v, w, b):
        mu = v.mean(axis=(1, 2), keepdims=True)
        var = ((v - mu) ** 2).mean(axis=(1, 2), keepdims=True)
        return (v - mu) / jnp.sqrt(var + LN_EPS) * w[None] + b[None]

    y = ln(x, p["norm1_w"], p["norm1_b"])
    t = jnp.einsum("hs,bsf->bhf", p["tok_w1"][:, :, 0], y) + p["tok_b1"][None, :, None]
    t = _gelu_exact(t)
    t = jnp.einsum("sh,bhf->bsf", p["tok_w2"][:, :, 0], t) + p["tok_b2"][None, :, None]
    x1 = x + t

    y2 = ln(x1, p["norm2_w"], p["norm2_b"])
    c = y2 @ p["ch_w1"].T + p["ch_b1"]
    c = _gelu_exact(c)
    c = c @ p["ch_w2"].T + p["ch_b2"]
    return x1 + c


def init_params(key, S, F, Ht, Hc):
    ks = jax.random.split(key, 4)
    f32 = jnp.float32
    return {
        # LayerNorm((S, F)) defaults: weight=1, bias=0, affine shape (S, F)
        "norm1_w": jnp.ones((S, F), f32),
        "norm1_b": jnp.zeros((S, F), f32),
        "norm2_w": jnp.ones((S, F), f32),
        "norm2_b": jnp.zeros((S, F), f32),
        # token-mixing Conv1d(S, Ht, 1) / Conv1d(Ht, S, 1)
        "tok_w1": jax.random.normal(ks[0], (Ht, S, 1), f32) * (2.0 / S) ** 0.5,
        "tok_b1": jnp.zeros((Ht,), f32),
        "tok_w2": jax.random.normal(ks[1], (S, Ht, 1), f32) * 0.02,
        "tok_b2": jnp.zeros((S,), f32),
        # channel-mixing Linear(F, Hc) / Linear(Hc, F)
        "ch_w1": jax.random.normal(ks[2], (Hc, F), f32) * (2.0 / F) ** 0.5,
        "ch_b1": jnp.zeros((Hc,), f32),
        "ch_w2": jax.random.normal(ks[3], (F, Hc), f32) * 0.02,
        "ch_b2": jnp.zeros((F,), f32),
    }


if __name__ == "__main__":
    B, S, F = 2, 8, 16          # batch, seq_len, in_features
    Ht, Hc = 32, 32             # hidden_token_mix, hidden_channel_mix

    key = jax.random.PRNGKey(0)
    kx, kp = jax.random.split(key)
    x = jax.random.normal(kx, (B, S, F), jnp.float32)
    params = init_params(kp, S, F, Ht, Hc)

    ref = mixer_block_ref(x, params)
    fwd = jax.jit(mixer_block, static_argnames=("matmul_dtype",))

    # f32 matmul path: bit-faithful to the f32 PyTorch module.
    out_f32 = jax.block_until_ready(fwd(x, params, matmul_dtype=jnp.float32))
    assert out_f32.shape == (B, S, F)
    assert jnp.allclose(out_f32, ref, atol=1e-4, rtol=1e-4), (
        f"f32 max err {jnp.max(jnp.abs(out_f32 - ref))}")

    # default bf16 matmul path (MXU-native inputs, f32 accumulation).
    out_bf16 = jax.block_until_ready(fwd(x, params))
    assert out_bf16.shape == (B, S, F)
    assert jnp.allclose(out_bf16, ref, atol=5e-2, rtol=5e-2), (
        f"bf16 max err {jnp.max(jnp.abs(out_bf16 - ref))}")

    print("KERNEL_OK")
</pallas_src>

<mosaic_0001>
module attributes {stable_mosaic.version = 11 : i64} {
  func.func @_mixer_block_kernel(%arg0: i32, %arg1: memref<1x8x16xf32, #tpu.memory_space<vmem>>, %arg2: memref<8x16xf32, #tpu.memory_space<vmem>>, %arg3: memref<8x16xf32, #tpu.memory_space<vmem>>, %arg4: memref<32x8xf32, #tpu.memory_space<vmem>>, %arg5: memref<32x1xf32, #tpu.memory_space<vmem>>, %arg6: memref<8x32xf32, #tpu.memory_space<vmem>>, %arg7: memref<8x1xf32, #tpu.memory_space<vmem>>, %arg8: memref<8x16xf32, #tpu.memory_space<vmem>>, %arg9: memref<8x16xf32, #tpu.memory_space<vmem>>, %arg10: memref<16x32xf32, #tpu.memory_space<vmem>>, %arg11: memref<1x32xf32, #tpu.memory_space<vmem>>, %arg12: memref<32x16xf32, #tpu.memory_space<vmem>>, %arg13: memref<1x16xf32, #tpu.memory_space<vmem>>, %arg14: memref<1x8x16xf32, #tpu.memory_space<vmem>>) attributes {dimension_semantics = [#tpu.dimension_semantics<parallel>], iteration_bounds = array<i64: 2>, scalar_prefetch = 0 : i64, scratch_operands = 0 : i64, tpu.core_type = #tpu.core_type<tc>, window_params = [{transform_indices = @transform_0, window_bounds = array<i64: 1, 8, 16>}, {pipeline_mode = #tpu.pipeline_mode<synchronous>, transform_indices = @transform_1, window_bounds = array<i64: 8, 16>}, {pipeline_mode = #tpu.pipeline_mode<synchronous>, transform_indices = @transform_2, window_bounds = array<i64: 8, 16>}, {pipeline_mode = #tpu.pipeline_mode<synchronous>, transform_indices = @transform_3, window_bounds = array<i64: 32, 8>}, {pipeline_mode = #tpu.pipeline_mode<synchronous>, transform_indices = @transform_4, window_bounds = array<i64: 32, 1>}, {pipeline_mode = #tpu.pipeline_mode<synchronous>, transform_indices = @transform_5, window_bounds = array<i64: 8, 32>}, {pipeline_mode = #tpu.pipeline_mode<synchronous>, transform_indices = @transform_6, window_bounds = array<i64: 8, 1>}, {pipeline_mode = #tpu.pipeline_mode<synchronous>, transform_indices = @transform_7, window_bounds = array<i64: 8, 16>}, {pipeline_mode = #tpu.pipeline_mode<synchronous>, transform_indices = @transform_8, window_bounds = array<i64: 8, 16>}, {pipeline_mode = #tpu.pipeline_mode<synchronous>, transform_indices = @transform_9, window_bounds = array<i64: 16, 32>}, {pipeline_mode = #tpu.pipeline_mode<synchronous>, transform_indices = @transform_10, window_bounds = array<i64: 1, 32>}, {pipeline_mode = #tpu.pipeline_mode<synchronous>, transform_indices = @transform_11, window_bounds = array<i64: 32, 16>}, {pipeline_mode = #tpu.pipeline_mode<synchronous>, transform_indices = @transform_12, window_bounds = array<i64: 1, 16>}, {transform_indices = @transform_13, window_bounds = array<i64: 1, 8, 16>}]} {
    %c0 = arith.constant 0 : index
    %c0_0 = arith.constant 0 : index
    %c0_1 = arith.constant 0 : index
    %0 = vector.load %arg1[%c0, %c0_0, %c0_1] : memref<1x8x16xf32, #tpu.memory_space<vmem>>, vector<1x8x16xf32>
    %1 = vector.shape_cast %0 : vector<1x8x16xf32> to vector<8x16xf32>
    %c0_2 = arith.constant 0 : index
    %c0_3 = arith.constant 0 : index
    %2 = vector.load %arg2[%c0_2, %c0_3] : memref<8x16xf32, #tpu.memory_space<vmem>>, vector<8x16xf32>
    %c0_4 = arith.constant 0 : index
    %c0_5 = arith.constant 0 : index
    %3 = vector.load %arg3[%c0_4, %c0_5] : memref<8x16xf32, #tpu.memory_space<vmem>>, vector<8x16xf32>
    %cst = arith.constant dense<0.000000e+00> : vector<8xf32>
    %4 = vector.multi_reduction <add>, %1, %cst [1] : vector<8x16xf32> to vector<8xf32>
    %5 = vector.shape_cast %4 : vector<8xf32> to vector<8x1xf32>
    %6 = arith.mulf %1, %1 : vector<8x16xf32>
    %cst_6 = arith.constant dense<0.000000e+00> : vector<8xf32>
    %7 = vector.multi_reduction <add>, %6, %cst_6 [1] : vector<8x16xf32> to vector<8xf32>
    %8 = vector.shape_cast %7 : vector<8xf32> to vector<8x1xf32>
    %cst_7 = arith.constant dense<0.000000e+00> : vector<1xf32>
    %9 = vector.multi_reduction <add>, %5, %cst_7 [0] : vector<8x1xf32> to vector<1xf32>
    %10 = vector.shape_cast %9 : vector<1xf32> to vector<1x1xf32>
    %cst_8 = arith.constant 7.812500e-03 : f32
    %11 = vector.broadcast %cst_8 : f32 to vector<1x1xf32>
    %12 = arith.mulf %10, %11 : vector<1x1xf32>
    %cst_9 = arith.constant dense<0.000000e+00> : vector<1xf32>
    %13 = vector.multi_reduction <add>, %8, %cst_9 [0] : vector<8x1xf32> to vector<1xf32>
    %14 = vector.shape_cast %13 : vector<1xf32> to vector<1x1xf32>
    %cst_10 = arith.constant 7.812500e-03 : f32
    %15 = vector.broadcast %cst_10 : f32 to vector<1x1xf32>
    %16 = arith.mulf %14, %15 : vector<1x1xf32>
    %17 = arith.mulf %12, %12 : vector<1x1xf32>
    %18 = arith.subf %16, %17 : vector<1x1xf32>
    %cst_11 = arith.constant 0.000000e+00 : f32
    %19 = vector.broadcast %cst_11 : f32 to vector<1x1xf32>
    %20 = arith.maximumf %18, %19 : vector<1x1xf32>
    %21 = vector.broadcast %12 : vector<1x1xf32> to vector<8x16xf32>
    %22 = arith.subf %1, %21 : vector<8x16xf32>
    %cst_12 = arith.constant 9.99999974E-6 : f32
    %23 = vector.broadcast %cst_12 : f32 to vector<1x1xf32>
    %24 = arith.addf %20, %23 : vector<1x1xf32>
    %25 = math.rsqrt %24 : vector<1x1xf32>
    %26 = vector.broadcast %25 : vector<1x1xf32> to vector<8x16xf32>
    %27 = arith.mulf %22, %26 : vector<8x16xf32>
    %28 = arith.mulf %27, %2 : vector<8x16xf32>
    %29 = arith.addf %28, %3 : vector<8x16xf32>
    %c0_13 = arith.constant 0 : index
    %c0_14 = arith.constant 0 : index
    %30 = vector.load %arg4[%c0_13, %c0_14] : memref<32x8xf32, #tpu.memory_space<vmem>>, vector<32x8xf32>
    %cst_15 = arith.constant dense<0.000000e+00> : vector<32x16xf32>
    %31 = tpu.matmul %30, %29, %cst_15 {dimension_numbers = #tpu.dot_dimension_numbers<[1], [0], [0], [1], [0, 0, 1, 1], [], []>} : vector<32x8xf32>, vector<8x16xf32>, vector<32x16xf32> -> vector<32x16xf32>
    %c0_16 = arith.constant 0 : index
    %c0_17 = arith.constant 0 : index
    %32 = vector.load %arg5[%c0_16, %c0_17] : memref<32x1xf32, #tpu.memory_space<vmem>>, vector<32x1xf32>
    %33 = vector.broadcast %32 : vector<32x1xf32> to vector<32x16xf32>
    %34 = arith.addf %31, %33 : vector<32x16xf32>
    %cst_18 = arith.constant 5.000000e-01 : f32
    %35 = vector.broadcast %cst_18 : f32 to vector<32x16xf32>
    %36 = arith.mulf %35, %34 : vector<32x16xf32>
    %cst_19 = arith.constant 0.707106769 : f32
    %37 = vector.broadcast %cst_19 : f32 to vector<32x16xf32>
    %38 = arith.mulf %34, %37 : vector<32x16xf32>
    %39 = math.erf %38 : vector<32x16xf32>
    %cst_20 = arith.constant 1.000000e+00 : f32
    %40 = vector.broadcast %cst_20 : f32 to vector<32x16xf32>
    %41 = arith.addf %40, %39 : vector<32x16xf32>
    %42 = arith.mulf %36, %41 : vector<32x16xf32>
    %c0_21 = arith.constant 0 : index
    %c0_22 = arith.constant 0 : index
    %43 = vector.load %arg6[%c0_21, %c0_22] : memref<8x32xf32, #tpu.memory_space<vmem>>, vector<8x32xf32>
    %cst_23 = arith.constant dense<0.000000e+00> : vector<8x16xf32>
    %44 = tpu.matmul %43, %42, %cst_23 {dimension_numbers = #tpu.dot_dimension_numbers<[1], [0], [0], [1], [0, 0, 1, 1], [], []>} : vector<8x32xf32>, vector<32x16xf32>, vector<8x16xf32> -> vector<8x16xf32>
    %c0_24 = arith.constant 0 : index
    %c0_25 = arith.constant 0 : index
    %45 = vector.load %arg7[%c0_24, %c0_25] : memref<8x1xf32, #tpu.memory_space<vmem>>, vector<8x1xf32>
    %46 = vector.broadcast %45 : vector<8x1xf32> to vector<8x16xf32>
    %47 = arith.addf %44, %46 : vector<8x16xf32>
    %c0_26 = arith.constant 0 : index
    %c0_27 = arith.constant 0 : index
    %c0_28 = arith.constant 0 : index
    %48 = vector.load %arg1[%c0_26, %c0_27, %c0_28] : memref<1x8x16xf32, #tpu.memory_space<vmem>>, vector<1x8x16xf32>
    %49 = vector.shape_cast %48 : vector<1x8x16xf32> to vector<8x16xf32>
    %50 = arith.addf %49, %47 : vector<8x16xf32>
    %c0_29 = arith.constant 0 : index
    %c0_30 = arith.constant 0 : index
    %c0_31 = arith.constant 0 : index
    %51 = vector.load %arg14[%c0_29, %c0_30, %c0_31] : memref<1x8x16xf32, #tpu.memory_space<vmem>>, vector<1x8x16xf32>
    %52 = vector.shape_cast %51 : vector<1x8x16xf32> to vector<8x16xf32>
    %53 = vector.shape_cast %50 : vector<8x16xf32> to vector<1x8x16xf32>
    tpu.vector_store %arg14[%c0_29, %c0_30, %c0_31], %53 {strides = array<i32>} : memref<1x8x16xf32, #tpu.memory_space<vmem>>, vector<1x8x16xf32>,
    %c0_32 = arith.constant 0 : index
    %c0_33 = arith.constant 0 : index
    %54 = vector.load %arg8[%c0_32, %c0_33] : memref<8x16xf32, #tpu.memory_space<vmem>>, vector<8x16xf32>
    %c0_34 = arith.constant 0 : index
    %c0_35 = arith.constant 0 : index
    %55 = vector.load %arg9[%c0_34, %c0_35] : memref<8x16xf32, #tpu.memory_space<vmem>>, vector<8x16xf32>
    %cst_36 = arith.constant dense<0.000000e+00> : vector<8xf32>
    %56 = vector.multi_reduction <add>, %50, %cst_36 [1] : vector<8x16xf32> to vector<8xf32>
    %57 = vector.shape_cast %56 : vector<8xf32> to vector<8x1xf32>
    %58 = arith.mulf %50, %50 : vector<8x16xf32>
    %cst_37 = arith.constant dense<0.000000e+00> : vector<8xf32>
    %59 = vector.multi_reduction <add>, %58, %cst_37 [1] : vector<8x16xf32> to vector<8xf32>
    %60 = vector.shape_cast %59 : vector<8xf32> to vector<8x1xf32>
    %cst_38 = arith.constant dense<0.000000e+00> : vector<1xf32>
    %61 = vector.multi_reduction <add>, %57, %cst_38 [0] : vector<8x1xf32> to vector<1xf32>
    %62 = vector.shape_cast %61 : vector<1xf32> to vector<1x1xf32>
    %cst_39 = arith.constant 7.812500e-03 : f32
    %63 = vector.broadcast %cst_39 : f32 to vector<1x1xf32>
    %64 = arith.mulf %62, %63 : vector<1x1xf32>
    %cst_40 = arith.constant dense<0.000000e+00> : vector<1xf32>
    %65 = vector.multi_reduction <add>, %60, %cst_40 [0] : vector<8x1xf32> to vector<1xf32>
    %66 = vector.shape_cast %65 : vector<1xf32> to vector<1x1xf32>
    %cst_41 = arith.constant 7.812500e-03 : f32
    %67 = vector.broadcast %cst_41 : f32 to vector<1x1xf32>
    %68 = arith.mulf %66, %67 : vector<1x1xf32>
    %69 = arith.mulf %64, %64 : vector<1x1xf32>
    %70 = arith.subf %68, %69 : vector<1x1xf32>
    %cst_42 = arith.constant 0.000000e+00 : f32
    %71 = vector.broadcast %cst_42 : f32 to vector<1x1xf32>
    %72 = arith.maximumf %70, %71 : vector<1x1xf32>
    %73 = vector.broadcast %64 : vector<1x1xf32> to vector<8x16xf32>
    %74 = arith.subf %50, %73 : vector<8x16xf32>
    %cst_43 = arith.constant 9.99999974E-6 : f32
    %75 = vector.broadcast %cst_43 : f32 to vector<1x1xf32>
    %76 = arith.addf %72, %75 : vector<1x1xf32>
    %77 = math.rsqrt %76 : vector<1x1xf32>
    %78 = vector.broadcast %77 : vector<1x1xf32> to vector<8x16xf32>
    %79 = arith.mulf %74, %78 : vector<8x16xf32>
    %80 = arith.mulf %79, %54 : vector<8x16xf32>
    %81 = arith.addf %80, %55 : vector<8x16xf32>
    %c0_44 = arith.constant 0 : index
    %c0_45 = arith.constant 0 : index
    %82 = vector.load %arg10[%c0_44, %c0_45] : memref<16x32xf32, #tpu.memory_space<vmem>>, vector<16x32xf32>
    %cst_46 = arith.constant dense<0.000000e+00> : vector<8x32xf32>
    %83 = tpu.matmul %81, %82, %cst_46 {dimension_numbers = #tpu.dot_dimension_numbers<[1], [0], [0], [1], [0, 0, 1, 1], [], []>} : vector<8x16xf32>, vector<16x32xf32>, vector<8x32xf32> -> vector<8x32xf32>
    %c0_47 = arith.constant 0 : index
    %c0_48 = arith.constant 0 : index
    %84 = vector.load %arg11[%c0_47, %c0_48] : memref<1x32xf32, #tpu.memory_space<vmem>>, vector<1x32xf32>
    %85 = vector.broadcast %84 : vector<1x32xf32> to vector<8x32xf32>
    %86 = arith.addf %83, %85 : vector<8x32xf32>
    %cst_49 = arith.constant 5.000000e-01 : f32
    %87 = vector.broadcast %cst_49 : f32 to vector<8x32xf32>
    %88 = arith.mulf %87, %86 : vector<8x32xf32>
    %cst_50 = arith.constant 0.707106769 : f32
    %89 = vector.broadcast %cst_50 : f32 to vector<8x32xf32>
    %90 = arith.mulf %86, %89 : vector<8x32xf32>
    %91 = math.erf %90 : vector<8x32xf32>
    %cst_51 = arith.constant 1.000000e+00 : f32
    %92 = vector.broadcast %cst_51 : f32 to vector<8x32xf32>
    %93 = arith.addf %92, %91 : vector<8x32xf32>
    %94 = arith.mulf %88, %93 : vector<8x32xf32>
    %c0_52 = arith.constant 0 : index
    %c0_53 = arith.constant 0 : index
    %95 = vector.load %arg12[%c0_52, %c0_53] : memref<32x16xf32, #tpu.memory_space<vmem>>, vector<32x16xf32>
    %cst_54 = arith.constant dense<0.000000e+00> : vector<8x16xf32>
    %96 = tpu.matmul %94, %95, %cst_54 {dimension_numbers = #tpu.dot_dimension_numbers<[1], [0], [0], [1], [0, 0, 1, 1], [], []>} : vector<8x32xf32>, vector<32x16xf32>, vector<8x16xf32> -> vector<8x16xf32>
    %c0_55 = arith.constant 0 : index
    %c0_56 = arith.constant 0 : index
    %97 = vector.load %arg13[%c0_55, %c0_56] : memref<1x16xf32, #tpu.memory_space<vmem>>, vector<1x16xf32>
    %98 = vector.broadcast %97 : vector<1x16xf32> to vector<8x16xf32>
    %99 = arith.addf %96, %98 : vector<8x16xf32>
    %c0_57 = arith.constant 0 : index
    %c0_58 = arith.constant 0 : index
    %c0_59 = arith.constant 0 : index
    %100 = vector.load %arg14[%c0_57, %c0_58, %c0_59] : memref<1x8x16xf32, #tpu.memory_space<vmem>>, vector<1x8x16xf32>
    %101 = vector.shape_cast %100 : vector<1x8x16xf32> to vector<8x16xf32>
    %102 = arith.addf %101, %99 : vector<8x16xf32>
    %c0_60 = arith.constant 0 : index
    %c0_61 = arith.constant 0 : index
    %c0_62 = arith.constant 0 : index
    %103 = vector.load %arg14[%c0_60, %c0_61, %c0_62] : memref<1x8x16xf32, #tpu.memory_space<vmem>>, vector<1x8x16xf32>
    %104 = vector.shape_cast %103 : vector<1x8x16xf32> to vector<8x16xf32>
    %105 = vector.shape_cast %102 : vector<8x16xf32> to vector<1x8x16xf32>
    tpu.vector_store %arg14[%c0_60, %c0_61, %c0_62], %105 {strides = array<i32>} : memref<1x8x16xf32, #tpu.memory_space<vmem>>, vector<1x8x16xf32>,
    return
  }
  func.func @transform_0(%arg0: i32) -> (i32, i32, i32) {
    %c0_i32 = arith.constant 0 : i32
    %c0_i32_0 = arith.constant 0 : i32
    %c0_i32_1 = arith.constant 0 : i32
    return %arg0, %c0_i32, %c0_i32_0 : i32, i32, i32
  }
  func.func @transform_1(%arg0: i32) -> (i32, i32) {
    %c0_i32 = arith.constant 0 : i32
    %c0_i32_0 = arith.constant 0 : i32
    %c0_i32_1 = arith.constant 0 : i32
    return %c0_i32, %c0_i32_0 : i32, i32
  }
  func.func @transform_2(%arg0: i32) -> (i32, i32) {
    %c0_i32 = arith.constant 0 : i32
    %c0_i32_0 = arith.constant 0 : i32
    %c0_i32_1 = arith.constant 0 : i32
    return %c0_i32, %c0_i32_0 : i32, i32
  }
  func.func @transform_3(%arg0: i32) -> (i32, i32) {
    %c0_i32 = arith.constant 0 : i32
    %c0_i32_0 = arith.constant 0 : i32
    %c0_i32_1 = arith.constant 0 : i32
    return %c0_i32, %c0_i32_0 : i32, i32
  }
  func.func @transform_4(%arg0: i32) -> (i32, i32) {
    %c0_i32 = arith.constant 0 : i32
    %c0_i32_0 = arith.constant 0 : i32
    %c0_i32_1 = arith.constant 0 : i32
    return %c0_i32, %c0_i32_0 : i32, i32
  }
  func.func @transform_5(%arg0: i32) -> (i32, i32) {
    %c0_i32 = arith.constant 0 : i32
    %c0_i32_0 = arith.constant 0 : i32
    %c0_i32_1 = arith.constant 0 : i32
    return %c0_i32, %c0_i32_0 : i32, i32
  }
  func.func @transform_6(%arg0: i32) -> (i32, i32) {
    %c0_i32 = arith.constant 0 : i32
    %c0_i32_0 = arith.constant 0 : i32
    %c0_i32_1 = arith.constant 0 : i32
    return %c0_i32, %c0_i32_0 : i32, i32
  }
  func.func @transform_7(%arg0: i32) -> (i32, i32) {
    %c0_i32 = arith.constant 0 : i32
    %c0_i32_0 = arith.constant 0 : i32
    %c0_i32_1 = arith.constant 0 : i32
    return %c0_i32, %c0_i32_0 : i32, i32
  }
  func.func @transform_8(%arg0: i32) -> (i32, i32) {
    %c0_i32 = arith.constant 0 : i32
    %c0_i32_0 = arith.constant 0 : i32
    %c0_i32_1 = arith.constant 0 : i32
    return %c0_i32, %c0_i32_0 : i32, i32
  }
  func.func @transform_9(%arg0: i32) -> (i32, i32) {
    %c0_i32 = arith.constant 0 : i32
    %c0_i32_0 = arith.constant 0 : i32
    %c0_i32_1 = arith.constant 0 : i32
    return %c0_i32, %c0_i32_0 : i32, i32
  }
  func.func @transform_10(%arg0: i32) -> (i32, i32) {
    %c0_i32 = arith.constant 0 : i32
    %c0_i32_0 = arith.constant 0 : i32
    %c0_i32_1 = arith.constant 0 : i32
    return %c0_i32, %c0_i32_0 : i32, i32
  }
  func.func @transform_11(%arg0: i32) -> (i32, i32) {
    %c0_i32 = arith.constant 0 : i32
    %c0_i32_0 = arith.constant 0 : i32
    %c0_i32_1 = arith.constant 0 : i32
    return %c0_i32, %c0_i32_0 : i32, i32
  }
  func.func @transform_12(%arg0: i32) -> (i32, i32) {
    %c0_i32 = arith.constant 0 : i32
    %c0_i32_0 = arith.constant 0 : i32
    %c0_i32_1 = arith.constant 0 : i32
    return %c0_i32, %c0_i32_0 : i32, i32
  }
  func.func @transform_13(%arg0: i32) -> (i32, i32, i32) {
    %c0_i32 = arith.constant 0 : i32
    %c0_i32_0 = arith.constant 0 : i32
    %c0_i32_1 = arith.constant 0 : i32
    return %arg0, %c0_i32, %c0_i32_0 : i32, i32, i32
  }
}

</mosaic_0001>

<llo_original>
// kernel: mixer_block.1
$region0: #{mixer_block.1}
  #allocation0 [shape = 'u32[]', space=smem, size = 0x4, offset = 0x4, fixed_abs, tag = 'smem constant byte address 0x4 - core index']
  #allocation1 [shape = 'u32[72,128]{1,0:T(1,128)}', space=vmem, size = 0x9000, scoped, tag = 'internal scratch']
  %s0 = inlined_call_operand.vmem [shape: f32[2,8,16], index: 0, kind: input, shape index: {}]
  %s1 = inlined_call_operand.vmem [shape: f32[8,16], index: 1, kind: input, shape index: {}]
  %s2 = inlined_call_operand.vmem [shape: f32[8,16], index: 2, kind: input, shape index: {}]
  %s3 = inlined_call_operand.vmem [shape: f32[32,8], index: 3, kind: input, shape index: {}]
  %s4 = inlined_call_operand.vmem [shape: f32[32,1], index: 4, kind: input, shape index: {}]
  %s5 = inlined_call_operand.vmem [shape: f32[8,32], index: 5, kind: input, shape index: {}]
  %s6 = inlined_call_operand.vmem [shape: f32[8,1], index: 6, kind: input, shape index: {}]
  %s7 = inlined_call_operand.vmem [shape: f32[8,16], index: 7, kind: input, shape index: {}]
  %s8 = inlined_call_operand.vmem [shape: f32[8,16], index: 8, kind: input, shape index: {}]
  %s9 = inlined_call_operand.vmem [shape: f32[16,32], index: 9, kind: input, shape index: {}]
  %s10 = inlined_call_operand.vmem [shape: f32[1,32], index: 10, kind: input, shape index: {}]
  %s11 = inlined_call_operand.vmem [shape: f32[32,16], index: 11, kind: input, shape index: {}]
  %s12 = inlined_call_operand.vmem [shape: f32[1,16], index: 12, kind: input, shape index: {}]
  %s13 = inlined_call_operand.hbm [shape: f32[2,8,16], index: 13, kind: output, shape index: {}]
  %s14 = sld [smem:[#allocation0]]
  $region85: #{mixer_block.1} parent=0
    _
  %s16 = ssub.s32 1, %s14
  %s17 = scalar_select 0, %s16, %s14
  $region1: #{mixer_block.1} parent=0
    #allocation2 [shape = 'u8[8192]{0}', space=vmem, size = 0x2000, scoped, tag = 'output window, operand 0']
    #allocation3 [shape = 's32[2]{0}', space=sflag, size = 0x8, scoped, tag = 'scoped memory for mixer_block.1']
    %18 = vsyncpa [#allocation3], 0
    %s19 = scalar_lea.sflag [#allocation3], 1
    %20 = vsyncpa %s19, 0
    loop: start=0, step=1, limit=4
    $region2: #{mixer_block.1} parent=1 // loop_pre_header
      _
    $region3: #{mixer_block.1} parent=1 // loop_header
      %s22 = sphi 0, %s26
      %p23 = scmp.ge.s32.totalorder %s22, 4
      %s32 = sphi 0, %s34
      %s35 = sphi 0, %s32
      %s36 = sphi 0, %s35
      %s52 = sphi 0, %s36
      %s56 = sphi 0, %s56
      %s58 = sphi 0, %s56
      %s59 = sphi 0, %s58
      %s73 = sphi 0, %s59
      %s77 = sphi 0, %s77
      %s79 = sphi 0, %s77
      %s80 = sphi 0, %s79
      %s94 = sphi 0, %s80
      %s98 = sphi 0, %s98
      %s100 = sphi 0, %s98
      %s101 = sphi 0, %s100
      %s115 = sphi 0, %s101
      %s119 = sphi 0, %s119
      %s121 = sphi 0, %s119
      %s122 = sphi 0, %s121
      %s136 = sphi 0, %s122
      %s140 = sphi 0, %s140
      %s142 = sphi 0, %s140
      %s143 = sphi 0, %s142
      %s157 = sphi 0, %s143
      %s161 = sphi 0, %s161
      %s163 = sphi 0, %s161
      %s164 = sphi 0, %s163
      %s178 = sphi 0, %s164
      %s182 = sphi 0, %s182
      %s184 = sphi 0, %s182
      %s185 = sphi 0, %s184
      %s199 = sphi 0, %s185
      %s203 = sphi 0, %s203
      %s205 = sphi 0, %s203
      %s206 = sphi 0, %s205
      %s220 = sphi 0, %s206
      %s224 = sphi 0, %s224
      %s226 = sphi 0, %s224
      %s227 = sphi 0, %s226
      %s241 = sphi 0, %s227
      %s245 = sphi 0, %s245
      %s247 = sphi 0, %s245
      %s248 = sphi 0, %s247
      %s262 = sphi 0, %s248
      %s266 = sphi 0, %s266
      %s268 = sphi 0, %s266
      %s269 = sphi 0, %s268
      %s283 = sphi 0, %s269
      %s287 = sphi 0, %s287
      %s289 = sphi 0, %s287
      %s290 = sphi 0, %s289
      %s304 = sphi 0, %s290
      %s310 = sphi 0, %s312
      %s313 = sphi 0, %s310
      %s314 = sphi 0, %s313
      %s330 = sphi 0, %s314
    $region4: #{mixer_block.1} parent=1 // loop_header_branch
      %25 = sbr.rel (%p23) target = $region8
    $region5: #{mixer_block.1} parent=1 // loop_body
      %s27 = ssub.s32 %s22, 1
      %s28 = ssub.s32 %s22, 2
      %s29 = sadd.s32 %s22, 1
      %s30 = ssub.s32 %s22, %s29
      %p31 = scmp.eq.s32.totalorder %s30, 0
      %s33 = sadd.s32 %s32, 1
      %s34 = scalar_select %p31, %s32, %s33
      %p37 = pneg %p31
      %p38 = scmp.eq.s32.totalorder %s22, 1
      %p39 = por %p37, %p38
      %p40 = scmp.ne.s32.totalorder %s32, %s35
      %p41 = scmp.eq.s32.totalorder %s22, 0
      %p42 = por %p40, %p41
      %p43 = scmp.ne.s32.totalorder %s32, %s35
      %p44 = scmp.eq.s32.totalorder %s27, 1
      %p45 = por %p43, %p44
      %p46 = scmp.ne.s32.totalorder %s35, %s36
      %p47 = scmp.eq.s32.totalorder %s27, 0
      %p48 = por %p46, %p47
      %p49 = scmp.ne.s32.totalorder %s35, %s36
      %p50 = scmp.eq.s32.totalorder %s28, 1
      %p51 = por %p49, %p50
      %p53 = scmp.ne.s32.totalorder %s36, %s52
      %p54 = scmp.eq.s32.totalorder %s28, 0
      %p55 = por %p53, %p54
      %s57 = sadd.s32 %s56, 1
      %p60 = scmp.eq.s32.totalorder %s22, 1
      %p61 = scmp.ne.s32.totalorder %s56, %s58
      %p62 = scmp.eq.s32.totalorder %s22, 0
      %p63 = por %p61, %p62
      %p64 = scmp.ne.s32.totalorder %s56, %s58
      %p65 = scmp.eq.s32.totalorder %s27, 1
      %p66 = por %p64, %p65
      %p67 = scmp.ne.s32.totalorder %s58, %s59
      %p68 = scmp.eq.s32.totalorder %s27, 0
      %p69 = por %p67, %p68
      %p70 = scmp.ne.s32.totalorder %s58, %s59
      %p71 = scmp.eq.s32.totalorder %s28, 1
      %p72 = por %p70, %p71
      %p74 = scmp.ne.s32.totalorder %s59, %s73
      %p75 = scmp.eq.s32.totalorder %s28, 0
      %p76 = por %p74, %p75
      %s78 = sadd.s32 %s77, 1
      %p81 = scmp.eq.s32.totalorder %s22, 1
      %p82 = scmp.ne.s32.totalorder %s77, %s79
      %p83 = scmp.eq.s32.totalorder %s22, 0
      %p84 = por %p82, %p83
      %p85 = scmp.ne.s32.totalorder %s77, %s79
      %p86 = scmp.eq.s32.totalorder %s27, 1
      %p87 = por %p85, %p86
      %p88 = scmp.ne.s32.totalorder %s79, %s80
      %p89 = scmp.eq.s32.totalorder %s27, 0
      %p90 = por %p88, %p89
      %p91 = scmp.ne.s32.totalorder %s79, %s80
      %p92 = scmp.eq.s32.totalorder %s28, 1
      %p93 = por %p91, %p92
      %p95 = scmp.ne.s32.totalorder %s80, %s94
      %p96 = scmp.eq.s32.totalorder %s28, 0
      %p97 = por %p95, %p96
      %s99 = sadd.s32 %s98, 1
      %p102 = scmp.eq.s32.totalorder %s22, 1
      %p103 = scmp.ne.s32.totalorder %s98, %s100
      %p104 = scmp.eq.s32.totalorder %s22, 0
      %p105 = por %p103, %p104
      %p106 = scmp.ne.s32.totalorder %s98, %s100
      %p107 = scmp.eq.s32.totalorder %s27, 1
      %p108 = por %p106, %p107
      %p109 = scmp.ne.s32.totalorder %s100, %s101
      %p110 = scmp.eq.s32.totalorder %s27, 0
      %p111 = por %p109, %p110
      %p112 = scmp.ne.s32.totalorder %s100, %s101
      %p113 = scmp.eq.s32.totalorder %s28, 1
      %p114 = por %p112, %p113
      %p116 = scmp.ne.s32.totalorder %s101, %s115
      %p117 = scmp.eq.s32.totalorder %s28, 0
      %p118 = por %p116, %p117
      %s120 = sadd.s32 %s119, 1
      %p123 = scmp.eq.s32.totalorder %s22, 1
      %p124 = scmp.ne.s32.totalorder %s119, %s121
      %p125 = scmp.eq.s32.totalorder %s22, 0
      %p126 = por %p124, %p125
      %p127 = scmp.ne.s32.totalorder %s119, %s121
      %p128 = scmp.eq.s32.totalorder %s27, 1
      %p129 = por %p127, %p128
      %p130 = scmp.ne.s32.totalorder %s121, %s122
      %p131 = scmp.eq.s32.totalorder %s27, 0
      %p132 = por %p130, %p131
      %p133 = scmp.ne.s32.totalorder %s121, %s122
      %p134 = scmp.eq.s32.totalorder %s28, 1
      %p135 = por %p133, %p134
      %p137 = scmp.ne.s32.totalorder %s122, %s136
      %p138 = scmp.eq.s32.totalorder %s28, 0
      %p139 = por %p137, %p138
      %s141 = sadd.s32 %s140, 1
      %p144 = scmp.eq.s32.totalorder %s22, 1
      %p145 = scmp.ne.s32.totalorder %s140, %s142
      %p146 = scmp.eq.s32.totalorder %s22, 0
      %p147 = por %p145, %p146
      %p148 = scmp.ne.s32.totalorder %s140, %s142
      %p149 = scmp.eq.s32.totalorder %s27, 1
      %p150 = por %p148, %p149
      %p151 = scmp.ne.s32.totalorder %s142, %s143
      %p152 = scmp.eq.s32.totalorder %s27, 0
      %p153 = por %p151, %p152
      %p154 = scmp.ne.s32.totalorder %s142, %s143
      %p155 = scmp.eq.s32.totalorder %s28, 1
      %p156 = por %p154, %p155
      %p158 = scmp.ne.s32.totalorder %s143, %s157
      %p159 = scmp.eq.s32.totalorder %s28, 0
      %p160 = por %p158, %p159
      %s162 = sadd.s32 %s161, 1
      %p165 = scmp.eq.s32.totalorder %s22, 1
      %p166 = scmp.ne.s32.totalorder %s161, %s163
      %p167 = scmp.eq.s32.totalorder %s22, 0
      %p168 = por %p166, %p167
      %p169 = scmp.ne.s32.totalorder %s161, %s163
      %p170 = scmp.eq.s32.totalorder %s27, 1
      %p171 = por %p169, %p170
      %p172 = scmp.ne.s32.totalorder %s163, %s164
      %p173 = scmp.eq.s32.totalorder %s27, 0
      %p174 = por %p172, %p173
      %p175 = scmp.ne.s32.totalorder %s163, %s164
      %p176 = scmp.eq.s32.totalorder %s28, 1
      %p177 = por %p175, %p176
      %p179 = scmp.ne.s32.totalorder %s164, %s178
      %p180 = scmp.eq.s32.totalorder %s28, 0
      %p181 = por %p179, %p180
      %s183 = sadd.s32 %s182, 1
      %p186 = scmp.eq.s32.totalorder %s22, 1
      %p187 = scmp.ne.s32.totalorder %s182, %s184
      %p188 = scmp.eq.s32.totalorder %s22, 0
      %p189 = por %p187, %p188
      %p190 = scmp.ne.s32.totalorder %s182, %s184
      %p191 = scmp.eq.s32.totalorder %s27, 1
      %p192 = por %p190, %p191
      %p193 = scmp.ne.s32.totalorder %s184, %s185
      %p194 = scmp.eq.s32.totalorder %s27, 0
      %p195 = por %p193, %p194
      %p196 = scmp.ne.s32.totalorder %s184, %s185
      %p197 = scmp.eq.s32.totalorder %s28, 1
      %p198 = por %p196, %p197
      %p200 = scmp.ne.s32.totalorder %s185, %s199
      %p201 = scmp.eq.s32.totalorder %s28, 0
      %p202 = por %p200, %p201
      %s204 = sadd.s32 %s203, 1
      %p207 = scmp.eq.s32.totalorder %s22, 1
      %p208 = scmp.ne.s32.totalorder %s203, %s205
      %p209 = scmp.eq.s32.totalorder %s22, 0
      %p210 = por %p208, %p209
      %p211 = scmp.ne.s32.totalorder %s203, %s205
      %p212 = scmp.eq.s32.totalorder %s27, 1
      %p213 = por %p211, %p212
      %p214 = scmp.ne.s32.totalorder %s205, %s206
      %p215 = scmp.eq.s32.totalorder %s27, 0
      %p216 = por %p214, %p215
      %p217 = scmp.ne.s32.totalorder %s205, %s206
      %p218 = scmp.eq.s32.totalorder %s28, 1
      %p219 = por %p217, %p218
      %p221 = scmp.ne.s32.totalorder %s206, %s220
      %p222 = scmp.eq.s32.totalorder %s28, 0
      %p223 = por %p221, %p222
      %s225 = sadd.s32 %s224, 1
      %p228 = scmp.eq.s32.totalorder %s22, 1
      %p229 = scmp.ne.s32.totalorder %s224, %s226
      %p230 = scmp.eq.s32.totalorder %s22, 0
      %p231 = por %p229, %p230
      %p232 = scmp.ne.s32.totalorder %s224, %s226
      %p233 = scmp.eq.s32.totalorder %s27, 1
      %p234 = por %p232, %p233
      %p235 = scmp.ne.s32.totalorder %s226, %s227
      %p236 = scmp.eq.s32.totalorder %s27, 0
      %p237 = por %p235, %p236
      %p238 = scmp.ne.s32.totalorder %s226, %s227
      %p239 = scmp.eq.s32.totalorder %s28, 1
      %p240 = por %p238, %p239
      %p242 = scmp.ne.s32.totalorder %s227, %s241
      %p243 = scmp.eq.s32.totalorder %s28, 0
      %p244 = por %p242, %p243
      %s246 = sadd.s32 %s245, 1
      %p249 = scmp.eq.s32.totalorder %s22, 1
      %p250 = scmp.ne.s32.totalorder %s245, %s247
      %p251 = scmp.eq.s32.totalorder %s22, 0
      %p252 = por %p250, %p251
      %p253 = scmp.ne.s32.totalorder %s245, %s247
      %p254 = scmp.eq.s32.totalorder %s27, 1
      %p255 = por %p253, %p254
      %p256 = scmp.ne.s32.totalorder %s247, %s248
      %p257 = scmp.eq.s32.totalorder %s27, 0
      %p258 = por %p256, %p257
      %p259 = scmp.ne.s32.totalorder %s247, %s248
      %p260 = scmp.eq.s32.totalorder %s28, 1
      %p261 = por %p259, %p260
      %p263 = scmp.ne.s32.totalorder %s248, %s262
      %p264 = scmp.eq.s32.totalorder %s28, 0
      %p265 = por %p263, %p264
      %s267 = sadd.s32 %s266, 1
      %p270 = scmp.eq.s32.totalorder %s22, 1
      %p271 = scmp.ne.s32.totalorder %s266, %s268
      %p272 = scmp.eq.s32.totalorder %s22, 0
      %p273 = por %p271, %p272
      %p274 = scmp.ne.s32.totalorder %s266, %s268
      %p275 = scmp.eq.s32.totalorder %s27, 1
      %p276 = por %p274, %p275
      %p277 = scmp.ne.s32.totalorder %s268, %s269
      %p278 = scmp.eq.s32.totalorder %s27, 0
      %p279 = por %p277, %p278
      %p280 = scmp.ne.s32.totalorder %s268, %s269
      %p281 = scmp.eq.s32.totalorder %s28, 1
      %p282 = por %p280, %p281
      %p284 = scmp.ne.s32.totalorder %s269, %s283
      %p285 = scmp.eq.s32.totalorder %s28, 0
      %p286 = por %p284, %p285
      %s288 = sadd.s32 %s287, 1
      %p291 = scmp.eq.s32.totalorder %s22, 1
      %p292 = scmp.ne.s32.totalorder %s287, %s289
      %p293 = scmp.eq.s32.totalorder %s22, 0
      %p294 = por %p292, %p293
      %p295 = scmp.ne.s32.totalorder %s287, %s289
      %p296 = scmp.eq.s32.totalorder %s27, 1
      %p297 = por %p295, %p296
      %p298 = scmp.ne.s32.totalorder %s289, %s290
      %p299 = scmp.eq.s32.totalorder %s27, 0
      %p300 = por %p298, %p299
      %p301 = scmp.ne.s32.totalorder %s289, %s290
      %p302 = scmp.eq.s32.totalorder %s28, 1
      %p303 = por %p301, %p302
      %p305 = scmp.ne.s32.totalorder %s290, %s304
      %p306 = scmp.eq.s32.totalorder %s28, 0
      %p307 = por %p305, %p306
      %s308 = ssub.s32 %s22, %s29
      %p309 = scmp.eq.s32.totalorder %s308, 0
      %s311 = sadd.s32 %s310, 1
      %s312 = scalar_select %p309, %s310, %s311
      %p315 = pneg %p309
      %p316 = scmp.eq.s32.totalorder %s22, 1
      %p317 = por %p315, %p316
      %p318 = scmp.ne.s32.totalorder %s310, %s313
      %p319 = scmp.eq.s32.totalorder %s22, 0
      %p320 = por %p318, %p319
      %p321 = scmp.ne.s32.totalorder %s310, %s313
      %p322 = scmp.eq.s32.totalorder %s27, 1
      %p323 = por %p321, %p322
      %p324 = scmp.ne.s32.totalorder %s313, %s314
      %p325 = scmp.eq.s32.totalorder %s27, 0
      %p326 = por %p324, %p325
      %p327 = scmp.ne.s32.totalorder %s313, %s314
      %p328 = scmp.eq.s32.totalorder %s28, 1
      %p329 = por %p327, %p328
      %p331 = scmp.ne.s32.totalorder %s314, %s330
      %p332 = scmp.eq.s32.totalorder %s28, 0
      %p333 = por %p331, %p332
      %p334 = scmp.le.s32.totalorder 1, %s22
      %p335 = scmp.lt.s32.totalorder %s22, 3
      %p336 = pnand %p334, %p335
      %p337 = pneg %p336
      // Predicated region
      $region9: #{mixer_block.1} parent=5 // pred_check
        _
      $region10: #{mixer_block.1} parent=5 // pred_check_branch
        %339 = sbr.rel (%p336) target = $region12
      $region11: #{mixer_block.1} parent=5 // pred_region
        %s340 = ssub.s32 %s22, 1
        // Predicated region
        $region13: #{mixer_block.1} parent=11 // pred_check
          %p341 = pneg %p69
        $region14: #{mixer_block.1} parent=11 // pred_check_branch
          %343 = sbr.rel (%p341) target = $region16
        $region15: #{mixer_block.1} parent=11 // pred_region
          _
        $region16: #{mixer_block.1} parent=11 // pred_fallthru
          _
        // Predicated region
        $region17: #{mixer_block.1} parent=11 // pred_check
          %p344 = pneg %p90
        $region18: #{mixer_block.1} parent=11 // pred_check_branch
          %346 = sbr.rel (%p344) target = $region20
        $region19: #{mixer_block.1} parent=11 // pred_region
          _
        $region20: #{mixer_block.1} parent=11 // pred_fallthru
          _
        // Predicated region
        $region21: #{mixer_block.1} parent=11 // pred_check
          %p347 = pneg %p111
        $region22: #{mixer_block.1} parent=11 // pred_check_branch
          %349 = sbr.rel (%p347) target = $region24
        $region23: #{mixer_block.1} parent=11 // pred_region
          _
        $region24: #{mixer_block.1} parent=11 // pred_fallthru
          _
        // Predicated region
        $region25: #{mixer_block.1} parent=11 // pred_check
          %p350 = pneg %p132
        $region26: #{mixer_block.1} parent=11 // pred_check_branch
          %352 = sbr.rel (%p350) target = $region28
        $region27: #{mixer_block.1} parent=11 // pred_region
          _
        $region28: #{mixer_block.1} parent=11 // pred_fallthru
          _
        // Predicated region
        $region29: #{mixer_block.1} parent=11 // pred_check
          %p353 = pneg %p153
        $region30: #{mixer_block.1} parent=11 // pred_check_branch
          %355 = sbr.rel (%p353) target = $region32
        $region31: #{mixer_block.1} parent=11 // pred_region
          _
        $region32: #{mixer_block.1} parent=11 // pred_fallthru
          _
        // Predicated region
        $region33: #{mixer_block.1} parent=11 // pred_check
          %p356 = pneg %p174
        $region34: #{mixer_block.1} parent=11 // pred_check_branch
          %358 = sbr.rel (%p356) target = $region36
        $region35: #{mixer_block.1} parent=11 // pred_region
          _
        $region36: #{mixer_block.1} parent=11 // pred_fallthru
          _
        // Predicated region
        $region37: #{mixer_block.1} parent=11 // pred_check
          %p359 = pneg %p195
        $region38: #{mixer_block.1} parent=11 // pred_check_branch
          %361 = sbr.rel (%p359) target = $region40
        $region39: #{mixer_block.1} parent=11 // pred_region
          _
        $region40: #{mixer_block.1} parent=11 // pred_fallthru
          _
        // Predicated region
        $region41: #{mixer_block.1} parent=11 // pred_check
          %p362 = pneg %p216
        $region42: #{mixer_block.1} parent=11 // pred_check_branch
          %364 = sbr.rel (%p362) target = $region44
        $region43: #{mixer_block.1} parent=11 // pred_region
          _
        $region44: #{mixer_block.1} parent=11 // pred_fallthru
          _
        // Predicated region
        $region45: #{mixer_block.1} parent=11 // pred_check
          %p365 = pneg %p237
        $region46: #{mixer_block.1} parent=11 // pred_check_branch
          %367 = sbr.rel (%p365) target = $region48
        $region47: #{mixer_block.1} parent=11 // pred_region
          _
        $region48: #{mixer_block.1} parent=11 // pred_fallthru
          _
        // Predicated region
        $region49: #{mixer_block.1} parent=11 // pred_check
          %p368 = pneg %p258
        $region50: #{mixer_block.1} parent=11 // pred_check_branch
          %370 = sbr.rel (%p368) target = $region52
        $region51: #{mixer_block.1} parent=11 // pred_region
          _
        $region52: #{mixer_block.1} parent=11 // pred_fallthru
          _
        // Predicated region
        $region53: #{mixer_block.1} parent=11 // pred_check
          %p371 = pneg %p279
        $region54: #{mixer_block.1} parent=11 // pred_check_branch
          %373 = sbr.rel (%p371) target = $region56
        $region55: #{mixer_block.1} parent=11 // pred_region
          _
        $region56: #{mixer_block.1} parent=11 // pred_fallthru
          _
        // Predicated region
        $region57: #{mixer_block.1} parent=11 // pred_check
          %p374 = pneg %p300
        $region58: #{mixer_block.1} parent=11 // pred_check_branch
          %376 = sbr.rel (%p374) target = $region60
        $region59: #{mixer_block.1} parent=11 // pred_region
          _
        $region60: #{mixer_block.1} parent=11 // pred_fallthru
          _
      $region12: #{mixer_block.1} parent=5 // pred_fallthru
        _
      %p377 = scmp.lt.s32.totalorder %s22, 2
      // Predicated region
      $region61: #{mixer_block.1} parent=5 // pred_check
        %p378 = pneg %p377
      $region62: #{mixer_block.1} parent=5 // pred_check_branch
        %380 = sbr.rel (%p378) target = $region64
      $region63: #{mixer_block.1} parent=5 // pred_region
        // Predicated region
        $region65: #{mixer_block.1} parent=63 // pred_check
          %p381 = pneg %p42
        $region66: #{mixer_block.1} parent=63 // pred_check_branch
          %383 = sbr.rel (%p381) target = $region68
        $region67: #{mixer_block.1} parent=63 // pred_region
          %p384 = scmp.lt.s32.totalorder %s22, 1
          %s385 = scalar_select %p384, %s22, 1
          %s386 = smul.addr %s385, 8
          %s387 = scalar_lea.vmem %s0, %s386
        $region68: #{mixer_block.1} parent=63 // pred_fallthru
          _
      $region64: #{mixer_block.1} parent=5 // pred_fallthru
        _
      %p388 = scmp.le.s32.totalorder 1, %s22
      %p389 = scmp.lt.s32.totalorder %s22, 3
      %p390 = pnand %p388, %p389
      %p391 = pneg %p390
      // Predicated region
      $region69: #{mixer_block.1} parent=5 // pred_check
        _
      $region70: #{mixer_block.1} parent=5 // pred_check_branch
        %393 = sbr.rel (%p390) target = $region72
      $region71: #{mixer_block.1} parent=5 // pred_region
        %s394 = ssub.s32 %s22, 1
        %p395 = scmp.lt.s32.totalorder %s27, 1
        %s396 = scalar_select %p395, %s27, 1
        %s397 = smul.addr %s396, 8
        %s398 = scalar_lea.vmem %s0, %s397
        %p399 = pneg %p48
        %p400 = pneg %p45
        %p401 = pneg %p69
        %p402 = pneg %p66
        %p403 = pneg %p90
        %p404 = pneg %p87
        %p405 = pneg %p111
        %p406 = pneg %p108
        %p407 = pneg %p132
        %p408 = pneg %p129
        %p409 = pneg %p153
        %p410 = pneg %p150
        %p411 = pneg %p174
        %p412 = pneg %p171
        %p413 = pneg %p195
        %p414 = pneg %p192
        %p415 = pneg %p216
        %p416 = pneg %p213
        %p417 = pneg %p237
        %p418 = pneg %p234
        %p419 = pneg %p258
        %p420 = pneg %p255
        %p421 = pneg %p279
        %p422 = pneg %p276
        %p423 = pneg %p300
        %p424 = pneg %p297
        %p425 = pneg %p326
        %p426 = pneg %p323
        %s427 = sand.u32 %s313, 1
        %s428 = scalar_lea.sflag [#allocation3], %s427
        %s429 = sand.u32 %s313, 1
        %s430 = smul.addr %s429, 8
        %s431 = scalar_lea.vmem [#allocation2], %s430
        %p432 = scmp.lt.s32.totalorder %s27, 1
        %s433 = scalar_select %p432, %s27, 1
        %s434 = smul.addr %s433, 8
        %s435 = scalar_lea.vmem %s0, %s434
        %v436 = vld [vmem:[%s435] sm:$0xff]
        %v437 = vld [vmem:[%s1] sm:$0xff]
        %v438 = vld [vmem:[%s2] sm:$0xff]
        %vm439 = vcmask 130048
        %v440 = vsel %vm439, %v436, 0.0
        %441 = vadd.xlane.f32.xlu0 %v440
        %v442 = vpop.xlane.xlu0 %441
        %v443 = vmul.f32 %v436, %v436
        %v444 = vsel %vm439, %v443, 0.0
        %445 = vadd.xlane.f32.xlu0 %v444
        %v446 = vpop.xlane.xlu0 %445
        %v447 = vrot.slane %v442, 4
        %v448 = vadd.f32 %v442, %v447
        %v449 = vrot.slane %v448, 2
        %v450 = vadd.f32 %v448, %v449
        %v451 = vrot.slane %v450, 1
        %v452 = vadd.f32 %v450, %v451
        %v453 = vmul.f32 %v452, 0.0078125
        %v454 = vrot.slane %v446, 4
        %v455 = vadd.f32 %v446, %v454
        %v456 = vrot.slane %v455, 2
        %v457 = vadd.f32 %v455, %v456
        %v458 = vrot.slane %v457, 1
        %v459 = vadd.f32 %v457, %v458
        %v460 = vmul.f32 %v459, 0.0078125
        %v461 = vmul.f32 %v453, %v453
        %v462 = vsub.f32 %v460, %v461
        %v463 = vmax.f32 %v462, 0.0
        %v464 = vsub.f32 %v436, %v453
        %v465 = vadd.f32 %v463, 1e-05
        %v466 = vrsqrt.pop %v465
        %v467 = vmul.f32 %v466, %v465
        %v468 = vmul.f32 %v467, %v466
        %v469 = vmul.f32 0.5, %v468
        %v470 = vsub.f32 1.5, %v469
        %v471 = vmul.f32 %v466, %v470
        %vm472 = vweird.f32 %v465
        %vm473 = vweird.f32 %v466
        %vm474 = vmor %vm472, %vm473
        %v475 = vsel %vm474, %v466, %v471
        %v476 = vmul.f32 %v464, %v475
        %v477 = vmul.f32 %v476, %v437
        %v478 = vadd.f32 %v477, %v438
        %v479 = vld [vmem:[%s3] sm:$0xff]
        %v480 = vld [vmem:[%s3 + $0x8] sm:$0xff]
        %v481 = vld [vmem:[%s3 + $0x10] sm:$0xff]
        %v482 = vld [vmem:[%s3 + $0x18] sm:$0xff]
        %v483 = vld [vmem:[%s4] sm:$0xff]
        %v484 = vld [vmem:[%s4 + $0x8] sm:$0xff]
        %v485 = vld [vmem:[%s4 + $0x10] sm:$0xff]
        %v486 = vld [vmem:[%s4 + $0x18] sm:$0xff]
        %488 = vset.pattern.permute.xlu0 0
        %489 = vperm.xlu0 %488, %v483
        %v490 = vpop.permute.xlu0 %489
        %493 = vset.pattern.permute.xlu0 0
        %494 = vperm.xlu0 %493, %v484
        %v495 = vpop.permute.xlu0 %494
        %498 = vset.pattern.permute.xlu0 0
        %499 = vperm.xlu0 %498, %v485
        %v500 = vpop.permute.xlu0 %499
        %503 = vset.pattern.permute.xlu0 0
        %504 = vperm.xlu0 %503, %v486
        %v505 = vpop.permute.xlu0 %504
        %vm507 = vcmask 64512
        %v509 = vsel %vm507, %v479, 0
        %v512 = vsel %vm507, %v480, 0
        %v515 = vsel %vm507, %v481, 0
        %v518 = vsel %vm507, %v482, 0
        %520 = vmatpush.msra.mxu0 0.0
        %521 = vmatpush.msra.mxu0 0.0
        %522 = vmatpush.msra.mxu0 0.0
        %523 = vmatpush.msra.mxu0 0.0
        %524 = vmatpush.msra.mxu0 0.0
        %525 = vmatpush.msra.mxu0 0.0
        %526 = vmatpush.msra.mxu0 0.0
        %527 = vmatpush.msra.mxu0 0.0
        %528 = vmatpush.msra.mxu0 0.0
        %529 = vmatpush.msra.mxu0 0.0
        %530 = vmatpush.msra.mxu0 0.0
        %531 = vmatpush.msra.mxu0 0.0
        %532 = vmatpush.msra.mxu0 0.0
        %533 = vmatpush.msra.mxu0 0.0
        %534 = vmatpush.msra.mxu0 0.0
        %535 = vmatpush.msra.mxu0 %v478
        %536 = vmatmul.f32.gmra.mxu0 %v509
        %v537 = vpop.f32.mrf.mxu0
        %v538 = vadd.f32 %v490, %v537
        %539 = vmatmul.f32.gmra.mxu0 %v512
        %v540 = vpop.f32.mrf.mxu0
        %v541 = vadd.f32 %v495, %v540
        %542 = vmatmul.f32.gmra.mxu0 %v515
        %v543 = vpop.f32.mrf.mxu0
        %v544 = vadd.f32 %v500, %v543
        %545 = vmatmul.f32.gmra.mxu0 %v518
        %v546 = vpop.f32.mrf.mxu0
        %v547 = vadd.f32 %v505, %v546
        %548 = vdwg.mxu0
        %v549 = vmul.f32 %v538, 0.5
        %v550 = vmul.f32 %v541, 0.5
        %v551 = vmul.f32 %v544, 0.5
        %v552 = vmul.f32 %v547, 0.5
        %v553 = vmul.f32 %v538, 0.70710677
        %v554 = vmul.f32 %v541, 0.70710677
        %v555 = vmul.f32 %v544, 0.70710677
        %v556 = vmul.f32 %v547, 0.70710677
        %v557 = vmul.f32 %v553, %v553
        %v558 = vmin.f32 16.0, %v557
        %v559 = vmul.f32 %v558, 2.1237322e-06
        %v560 = vadd.f32 %v559, 0.00028619796
        %v561 = vmul.f32 %v558, %v560
        %v562 = vadd.f32 %v561, 0.0036580483
        %v563 = vmul.f32 %v558, %v562
        %v564 = vadd.f32 %v563, 0.05243302
        %v565 = vmul.f32 %v558, %v564
        %v566 = vadd.f32 %v565, 0.18741608
        %v567 = vmul.f32 %v558, %v566
        %v568 = vadd.f32 %v567, 1.1283791
        %v569 = vmul.f32 %v553, %v568
        %v570 = vmul.f32 %v558, 3.8918573e-05
        %v571 = vadd.f32 %v570, 0.001143296
        %v572 = vmul.f32 %v558, %v571
        %v573 = vadd.f32 %v572, 0.014752088
        %v574 = vmul.f32 %v558, %v573
        %v575 = vadd.f32 %v574, 0.112945676
        %v576 = vmul.f32 %v558, %v575
        %v577 = vadd.f32 %v576, 0.4994258
        %v578 = vmul.f32 %v558, %v577
        %v579 = vadd.f32 %v578, 1.0
        %v580 = vrcp.pop %v579
        %v581 = vmul.f32 %v579, %v580
        %v582 = vsub.f32 1.0, %v581
        %v583 = vmul.f32 %v580, %v582
        %v584 = vadd.f32 %v580, %v583
        %vm585 = vweird.f32 %v579
        %vm586 = vweird.f32 %v580
        %vm587 = vmor %vm585, %vm586
        %v588 = vsel %vm587, %v580, %v584
        %v589 = vand.u32 2147483647, %v579
        %vm590 = vcmp.eq.f32.partialorder %v589, 8.507059e+37
        %v591 = vand.u32 %v579, 2147483648
        %v592 = vor.u32 1.1754944e-38, %v591
        %v593 = vsel %vm590, %v592, %v588
        %v594 = vmul.f32 %v569, %v593
        %v595 = vmin.f32 %v594, 1.0
        %v596 = vmax.f32 %v595, -1.0
        %v597 = vmul.f32 %v554, %v554
        %v598 = vmin.f32 16.0, %v597
        %v599 = vmul.f32 %v598, 2.1237322e-06
        %v600 = vadd.f32 %v599, 0.00028619796
        %v601 = vmul.f32 %v598, %v600
        %v602 = vadd.f32 %v601, 0.0036580483
        %v603 = vmul.f32 %v598, %v602
        %v604 = vadd.f32 %v603, 0.05243302
        %v605 = vmul.f32 %v598, %v604
        %v606 = vadd.f32 %v605, 0.18741608
        %v607 = vmul.f32 %v598, %v606
        %v608 = vadd.f32 %v607, 1.1283791
        %v609 = vmul.f32 %v554, %v608
        %v610 = vmul.f32 %v598, 3.8918573e-05
        %v611 = vadd.f32 %v610, 0.001143296
        %v612 = vmul.f32 %v598, %v611
        %v613 = vadd.f32 %v612, 0.014752088
        %v614 = vmul.f32 %v598, %v613
        %v615 = vadd.f32 %v614, 0.112945676
        %v616 = vmul.f32 %v598, %v615
        %v617 = vadd.f32 %v616, 0.4994258
        %v618 = vmul.f32 %v598, %v617
        %v619 = vadd.f32 %v618, 1.0
        %v620 = vrcp.pop %v619
        %v621 = vmul.f32 %v619, %v620
        %v622 = vsub.f32 1.0, %v621
        %v623 = vmul.f32 %v620, %v622
        %v624 = vadd.f32 %v620, %v623
        %vm625 = vweird.f32 %v619
        %vm626 = vweird.f32 %v620
        %vm627 = vmor %vm625, %vm626
        %v628 = vsel %vm627, %v620, %v624
        %v629 = vand.u32 2147483647, %v619
        %vm630 = vcmp.eq.f32.partialorder %v629, 8.507059e+37
        %v631 = vand.u32 %v619, 2147483648
        %v632 = vor.u32 1.1754944e-38, %v631
        %v633 = vsel %vm630, %v632, %v628
        %v634 = vmul.f32 %v609, %v633
        %v635 = vmin.f32 %v634, 1.0
        %v636 = vmax.f32 %v635, -1.0
        %v637 = vmul.f32 %v555, %v555
        %v638 = vmin.f32 16.0, %v637
        %v639 = vmul.f32 %v638, 2.1237322e-06
        %v640 = vadd.f32 %v639, 0.00028619796
        %v641 = vmul.f32 %v638, %v640
        %v642 = vadd.f32 %v641, 0.0036580483
        %v643 = vmul.f32 %v638, %v642
        %v644 = vadd.f32 %v643, 0.05243302
        %v645 = vmul.f32 %v638, %v644
        %v646 = vadd.f32 %v645, 0.18741608
        %v647 = vmul.f32 %v638, %v646
        %v648 = vadd.f32 %v647, 1.1283791
        %v649 = vmul.f32 %v555, %v648
        %v650 = vmul.f32 %v638, 3.8918573e-05
        %v651 = vadd.f32 %v650, 0.001143296
        %v652 = vmul.f32 %v638, %v651
        %v653 = vadd.f32 %v652, 0.014752088
        %v654 = vmul.f32 %v638, %v653
        %v655 = vadd.f32 %v654, 0.112945676
        %v656 = vmul.f32 %v638, %v655
        %v657 = vadd.f32 %v656, 0.4994258
        %v658 = vmul.f32 %v638, %v657
        %v659 = vadd.f32 %v658, 1.0
        %v660 = vrcp.pop %v659
        %v661 = vmul.f32 %v659, %v660
        %v662 = vsub.f32 1.0, %v661
        %v663 = vmul.f32 %v660, %v662
        %v664 = vadd.f32 %v660, %v663
        %vm665 = vweird.f32 %v659
        %vm666 = vweird.f32 %v660
        %vm667 = vmor %vm665, %vm666
        %v668 = vsel %vm667, %v660, %v664
        %v669 = vand.u32 2147483647, %v659
        %vm670 = vcmp.eq.f32.partialorder %v669, 8.507059e+37
        %v671 = vand.u32 %v659, 2147483648
        %v672 = vor.u32 1.1754944e-38, %v671
        %v673 = vsel %vm670, %v672, %v668
        %v674 = vmul.f32 %v649, %v673
        %v675 = vmin.f32 %v674, 1.0
        %v676 = vmax.f32 %v675, -1.0
        %v677 = vmul.f32 %v556, %v556
        %v678 = vmin.f32 16.0, %v677
        %v679 = vmul.f32 %v678, 2.1237322e-06
        %v680 = vadd.f32 %v679, 0.00028619796
        %v681 = vmul.f32 %v678, %v680
        %v682 = vadd.f32 %v681, 0.0036580483
        %v683 = vmul.f32 %v678, %v682
        %v684 = vadd.f32 %v683, 0.05243302
        %v685 = vmul.f32 %v678, %v684
        %v686 = vadd.f32 %v685, 0.18741608
        %v687 = vmul.f32 %v678, %v686
        %v688 = vadd.f32 %v687, 1.1283791
        %v689 = vmul.f32 %v556, %v688
        %v690 = vmul.f32 %v678, 3.8918573e-05
        %v691 = vadd.f32 %v690, 0.001143296
        %v692 = vmul.f32 %v678, %v691
        %v693 = vadd.f32 %v692, 0.014752088
        %v694 = vmul.f32 %v678, %v693
        %v695 = vadd.f32 %v694, 0.112945676
        %v696 = vmul.f32 %v678, %v695
        %v697 = vadd.f32 %v696, 0.4994258
        %v698 = vmul.f32 %v678, %v697
        %v699 = vadd.f32 %v698, 1.0
        %v700 = vrcp.pop %v699
        %v701 = vmul.f32 %v699, %v700
        %v702 = vsub.f32 1.0, %v701
        %v703 = vmul.f32 %v700, %v702
        %v704 = vadd.f32 %v700, %v703
        %vm705 = vweird.f32 %v699
        %vm706 = vweird.f32 %v700
        %vm707 = vmor %vm705, %vm706
        %v708 = vsel %vm707, %v700, %v704
        %v709 = vand.u32 2147483647, %v699
        %vm710 = vcmp.eq.f32.partialorder %v709, 8.507059e+37
        %v711 = vand.u32 %v699, 2147483648
        %v712 = vor.u32 1.1754944e-38, %v711
        %v713 = vsel %vm710, %v712, %v708
        %v714 = vmul.f32 %v689, %v713
        %v715 = vmin.f32 %v714, 1.0
        %v716 = vmax.f32 %v715, -1.0
        %v717 = vadd.f32 %v596, 1.0
        %v718 = vadd.f32 %v636, 1.0
        %v719 = vadd.f32 %v676, 1.0
        %v720 = vadd.f32 %v716, 1.0
        %v721 = vmul.f32 %v549, %v717
        %v722 = vmul.f32 %v550, %v718
        %v723 = vmul.f32 %v551, %v719
        %v724 = vmul.f32 %v552, %v720
        %v725 = vld [vmem:[%s5] sm:$0xff]
        %v726 = vld [vmem:[%s6] sm:$0xff]
        %728 = vset.pattern.permute.xlu0 0
        %729 = vperm.xlu0 %728, %v726
        %v730 = vpop.permute.xlu0 %729
        %vm732 = vcmask 261120
        %v734 = vsel %vm732, %v725, 0
        %736 = vmatpush.msra.mxu0 0.0
        %737 = vmatpush.msra.mxu0 0.0
        %738 = vmatpush.msra.mxu0 0.0
        %739 = vmatpush.msra.mxu0 0.0
        %740 = vmatpush.msra.mxu0 0.0
        %741 = vmatpush.msra.mxu0 0.0
        %742 = vmatpush.msra.mxu0 0.0
        %743 = vmatpush.msra.mxu0 0.0
        %744 = vmatpush.msra.mxu0 0.0
        %745 = vmatpush.msra.mxu0 0.0
        %746 = vmatpush.msra.mxu0 0.0
        %747 = vmatpush.msra.mxu0 0.0
        %748 = vmatpush.msra.mxu0 %v724
        %749 = vmatpush.msra.mxu0 %v723
        %750 = vmatpush.msra.mxu0 %v722
        %751 = vmatpush.msra.mxu0 %v721
        %752 = vmatmul.f32.gmra.mxu0 %v734
        %v753 = vpop.f32.mrf.mxu0
        %v754 = vadd.f32 %v730, %v753
        %755 = vdwg.mxu0
        %v756 = vadd.f32 %v436, %v754
        %757 = vst.msk [vmem:[%s431] sm:$0xff] %vm439, %v756
        %v758 = vld [vmem:[%s7] sm:$0xff]
        %v759 = vld [vmem:[%s8] sm:$0xff]
        %v760 = vsel %vm439, %v756, 0.0
        %761 = vadd.xlane.f32.xlu0 %v760
        %v762 = vpop.xlane.xlu0 %761
        %v763 = vmul.f32 %v756, %v756
        %v764 = vsel %vm439, %v763, 0.0
        %765 = vadd.xlane.f32.xlu0 %v764
        %v766 = vpop.xlane.xlu0 %765
        %v767 = vrot.slane %v762, 4
        %v768 = vadd.f32 %v762, %v767
        %v769 = vrot.slane %v768, 2
        %v770 = vadd.f32 %v768, %v769
        %v771 = vrot.slane %v770, 1
        %v772 = vadd.f32 %v770, %v771
        %v773 = vmul.f32 %v772, 0.0078125
        %v774 = vrot.slane %v766, 4
        %v775 = vadd.f32 %v766, %v774
        %v776 = vrot.slane %v775, 2
        %v777 = vadd.f32 %v775, %v776
        %v778 = vrot.slane %v777, 1
        %v779 = vadd.f32 %v777, %v778
        %v780 = vmul.f32 %v779, 0.0078125
        %v781 = vmul.f32 %v773, %v773
        %v782 = vsub.f32 %v780, %v781
        %v783 = vmax.f32 %v782, 0.0
        %v784 = vsub.f32 %v756, %v773
        %v785 = vadd.f32 %v783, 1e-05
        %v786 = vrsqrt.pop %v785
        %v787 = vmul.f32 %v786, %v785
        %v788 = vmul.f32 %v787, %v786
        %v789 = vmul.f32 0.5, %v788
        %v790 = vsub.f32 1.5, %v789
        %v791 = vmul.f32 %v786, %v790
        %vm792 = vweird.f32 %v785
        %vm793 = vweird.f32 %v786
        %vm794 = vmor %vm792, %vm793
        %v795 = vsel %vm794, %v786, %v791
        %v796 = vmul.f32 %v784, %v795
        %v797 = vmul.f32 %v796, %v758
        %v798 = vadd.f32 %v797, %v759
        %v799 = vld [vmem:[%s9] sm:$0xff]
        %v800 = vld [vmem:[%s9 + $0x8] sm:$0xff]
        %v801 = vld [vmem:[%s10] sm:$0x1]
        %v803 = vperm.slane %v801, 0
        %v806 = vsel %vm439, %v798, 0
        %808 = vmatpush.msra.mxu0 0.0
        %809 = vmatpush.msra.mxu0 0.0
        %810 = vmatpush.msra.mxu0 0.0
        %811 = vmatpush.msra.mxu0 0.0
        %812 = vmatpush.msra.mxu0 0.0
        %813 = vmatpush.msra.mxu0 0.0
        %814 = vmatpush.msra.mxu0 0.0
        %815 = vmatpush.msra.mxu0 0.0
        %816 = vmatpush.msra.mxu0 0.0
        %817 = vmatpush.msra.mxu0 0.0
        %818 = vmatpush.msra.mxu0 0.0
        %819 = vmatpush.msra.mxu0 0.0
        %820 = vmatpush.msra.mxu0 0.0
        %821 = vmatpush.msra.mxu0 0.0
        %822 = vmatpush.msra.mxu0 %v800
        %823 = vmatpush.msra.mxu0 %v799
        %824 = vmatmul.f32.gmra.mxu0 %v806
        %v825 = vpop.f32.mrf.mxu0
        %v826 = vadd.f32 %v803, %v825
        %827 = vdwg.mxu0
        %v828 = vmul.f32 %v826, 0.5
        %v829 = vmul.f32 %v826, 0.70710677
        %v830 = vmul.f32 %v829, %v829
        %v831 = vmin.f32 16.0, %v830
        %v832 = vmul.f32 %v831, 2.1237322e-06
        %v833 = vadd.f32 %v832, 0.00028619796
        %v834 = vmul.f32 %v831, %v833
        %v835 = vadd.f32 %v834, 0.0036580483
        %v836 = vmul.f32 %v831, %v835
        %v837 = vadd.f32 %v836, 0.05243302
        %v838 = vmul.f32 %v831, %v837
        %v839 = vadd.f32 %v838, 0.18741608
        %v840 = vmul.f32 %v831, %v839
        %v841 = vadd.f32 %v840, 1.1283791
        %v842 = vmul.f32 %v829, %v841
        %v843 = vmul.f32 %v831, 3.8918573e-05
        %v844 = vadd.f32 %v843, 0.001143296
        %v845 = vmul.f32 %v831, %v844
        %v846 = vadd.f32 %v845, 0.014752088
        %v847 = vmul.f32 %v831, %v846
        %v848 = vadd.f32 %v847, 0.112945676
        %v849 = vmul.f32 %v831, %v848
        %v850 = vadd.f32 %v849, 0.4994258
        %v851 = vmul.f32 %v831, %v850
        %v852 = vadd.f32 %v851, 1.0
        %v853 = vrcp.pop %v852
        %v854 = vmul.f32 %v852, %v853
        %v855 = vsub.f32 1.0, %v854
        %v856 = vmul.f32 %v853, %v855
        %v857 = vadd.f32 %v853, %v856
        %vm858 = vweird.f32 %v852
        %vm859 = vweird.f32 %v853
        %vm860 = vmor %vm858, %vm859
        %v861 = vsel %vm860, %v853, %v857
        %v862 = vand.u32 2147483647, %v852
        %vm863 = vcmp.eq.f32.partialorder %v862, 8.507059e+37
        %v864 = vand.u32 %v852, 2147483648
        %v865 = vor.u32 1.1754944e-38, %v864
        %v866 = vsel %vm863, %v865, %v861
        %v867 = vmul.f32 %v842, %v866
        %v868 = vmin.f32 %v867, 1.0
        %v869 = vmax.f32 %v868, -1.0
        %v870 = vadd.f32 %v869, 1.0
        %v871 = vmul.f32 %v828, %v870
        %v872 = vld [vmem:[%s11] sm:$0xff]
        %v873 = vld [vmem:[%s11 + $0x8] sm:$0xff]
        %v874 = vld [vmem:[%s11 + $0x10] sm:$0xff]
        %v875 = vld [vmem:[%s11 + $0x18] sm:$0xff]
        %v876 = vld [vmem:[%s12] sm:$0x1]
        %v878 = vperm.slane %v876, 0
        %v881 = vsel %vm732, %v871, 0
        %883 = vmatpush.msra.mxu0 0.0
        %884 = vmatpush.msra.mxu0 0.0
        %885 = vmatpush.msra.mxu0 0.0
        %886 = vmatpush.msra.mxu0 0.0
        %887 = vmatpush.msra.mxu0 0.0
        %888 = vmatpush.msra.mxu0 0.0
        %889 = vmatpush.msra.mxu0 0.0
        %890 = vmatpush.msra.mxu0 0.0
        %891 = vmatpush.msra.mxu0 0.0
        %892 = vmatpush.msra.mxu0 0.0
        %893 = vmatpush.msra.mxu0 0.0
        %894 = vmatpush.msra.mxu0 0.0
        %895 = vmatpush.msra.mxu0 %v875
        %896 = vmatpush.msra.mxu0 %v874
        %897 = vmatpush.msra.mxu0 %v873
        %898 = vmatpush.msra.mxu0 %v872
        %899 = vmatmul.f32.gmra.mxu0 %v881
        %v900 = vpop.f32.mrf.mxu0
        %v901 = vadd.f32 %v878, %v900
        %902 = vdwg.mxu0
        %v903 = vld [vmem:[%s431] sm:$0xff]
        %v904 = vadd.f32 %v903, %v901
        %905 = vst.msk [vmem:[%s431] sm:$0xff] %vm439, %v904
        %s906 = sand.u32 %s313, 1
        %s907 = scalar_lea.sflag [#allocation3], %s906
        %s908 = sand.u32 %s313, 1
        %s909 = smul.addr %s908, 8
        %s910 = scalar_lea.vmem [#allocation2], %s909
        // Predicated region
        $region73: #{mixer_block.1} parent=71 // pred_check
          %p911 = pneg %p323
        $region74: #{mixer_block.1} parent=71 // pred_check_branch
          %913 = sbr.rel (%p911) target = $region76
        $region75: #{mixer_block.1} parent=71 // pred_region
          %915 = vsyncadd %s907, 0
          %s916 = smul.addr %s27, 8
          %s917 = scalar_lea.hbm %s13, %s916
          %s919 = sshll.u32 %s910, 4
          %s920 = int_to_ptr.vmem [resolvable:$true] %s919
          %s921 = sshll.u32 %s917, 4
          %s922 = int_to_ptr.hbm [resolvable:$true] %s921
          %924 = dma.vmem_to_hbm [thread:$0]  %s920, 128, %s922, %s907
        $region76: #{mixer_block.1} parent=71 // pred_fallthru
          _
      $region72: #{mixer_block.1} parent=5 // pred_fallthru
        _
      %p925 = scmp.le.s32.totalorder 2, %s22
      // Predicated region
      $region77: #{mixer_block.1} parent=5 // pred_check
        %p926 = pneg %p925
      $region78: #{mixer_block.1} parent=5 // pred_check_branch
        %928 = sbr.rel (%p926) target = $region80
      $region79: #{mixer_block.1} parent=5 // pred_region
        %s929 = ssub.s32 %s22, 2
        // Predicated region
        $region81: #{mixer_block.1} parent=79 // pred_check
          %p930 = pneg %p329
        $region82: #{mixer_block.1} parent=79 // pred_check_branch
          %932 = sbr.rel (%p930) target = $region84
        $region83: #{mixer_block.1} parent=79 // pred_region
          %s933 = sand.u32 %s314, 1
          %s934 = scalar_lea.sflag [#allocation3], %s933
          %s935 = sand.u32 %s314, 1
          %s936 = smul.addr %s935, 8
          %s937 = scalar_lea.vmem [#allocation2], %s936
          %939 = dma.done %s934, 128
        $region84: #{mixer_block.1} parent=79 // pred_fallthru
          _
      $region80: #{mixer_block.1} parent=5 // pred_fallthru
        _
    $region6: #{mixer_block.1} parent=1 // loop_footer
      %s26 = sadd.s32 1, %s22
    $region7: #{mixer_block.1} parent=1 // loop_footer_branch
      %21 = sbr.rel target = $region3
    $region8: #{mixer_block.1} parent=1 // loop_exit
      _
    %940 = vsyncpa [#allocation3], 1
    %s941 = scalar_lea.sflag [#allocation3], 1
    %942 = vsyncpa %s941, 1

</llo_original>
